<compile_context>
chip_gen: v7x
topology: tpu7x:2x2x1
jax: 0.10.0
libtpu: 0.0.40
codegen_flags: <defaults>
</compile_context>

<pallas_src>
import functools

import jax
import jax.numpy as jnp
from jax.experimental import pallas as pl
from jax.experimental.pallas import tpu as pltpu

DESCRIPTION_SIZE = 768
_LANE = 128


def _round_up(x, m):
    return (x + m - 1) // m * m


def node_embed_kernel(idx_ref, vals_ref, table_ref, wv_ref, b_ref, out_ref):
    tm = idx_ref.shape[0]
    d_pad = table_ref.shape[0]
    # Fused description gather on the MXU:
    #   onehot [tm, D_pad] @ table_proj [D_pad, P_pad] == table_proj[idx]
    idx = idx_ref[...]                                              # [tm, 1] int32
    iota = jax.lax.broadcasted_iota(jnp.int32, (tm, d_pad), 1)      # [tm, D_pad]
    onehot = (iota == idx).astype(jnp.float32)                      # [tm, D_pad]
    desc_proj = jnp.dot(onehot, table_ref[...],
                        preferred_element_type=jnp.float32)         # [tm, P_pad]
    # Rank-1 folded value_embedding path + folded bias (VPU broadcast FMA).
    out_ref[...] = (desc_proj
                    + vals_ref[...] * wv_ref[...]
                    + b_ref[...]).astype(out_ref.dtype)


@functools.partial(jax.jit, static_argnames=("proj_dim", "tm"))
def node_embedder_forward(description_idx, values, table_proj, wv_proj, b_proj,
                          *, proj_dim, tm=256):
    """description_idx: [B,N] int, values: [B,N,1] float. Returns [B,N,proj_dim]."""
    B, N = description_idx.shape
    M = B * N
    d_pad, p_pad = table_proj.shape

    # Adaptive row tile: big tiles for large M (amortize grid-step overhead,
    # fill MXU rows), shrink for tiny inputs. Always a multiple of 8 sublanes.
    tm_eff = min(tm, _round_up(M, 8))
    M_pad = _round_up(M, tm_eff)

    idx = description_idx.reshape(M, 1).astype(jnp.int32)
    vals = values.reshape(M, 1).astype(jnp.float32)
    if M_pad != M:
        idx = jnp.pad(idx, ((0, M_pad - M), (0, 0)))    # pad -> row 0 (valid, sliced off)
        vals = jnp.pad(vals, ((0, M_pad - M), (0, 0)))

    out = pl.pallas_call(
        node_embed_kernel,
        out_shape=jax.ShapeDtypeStruct((M_pad, p_pad), jnp.float32),
        grid_spec=pltpu.PrefetchScalarGridSpec(
            num_scalar_prefetch=0,
            grid=(M_pad // tm_eff,),
            in_specs=[
                pl.BlockSpec((tm_eff, 1), lambda i: (i, 0)),        # idx
                pl.BlockSpec((tm_eff, 1), lambda i: (i, 0)),        # values
                pl.BlockSpec((d_pad, p_pad), lambda i: (0, 0)),     # table_proj (VMEM-resident)
                pl.BlockSpec((1, p_pad), lambda i: (0, 0)),         # wv_proj
                pl.BlockSpec((1, p_pad), lambda i: (0, 0)),         # b_proj
            ],
            out_specs=pl.BlockSpec((tm_eff, p_pad), lambda i: (i, 0)),
        ),
        compiler_params=pltpu.CompilerParams(
            dimension_semantics=("parallel",),
            vmem_limit_bytes=64 * 1024 * 1024),
    )(idx, vals, table_proj, wv_proj, b_proj)

    return out[:M, :proj_dim].reshape(B, N, proj_dim)


def fold_params(params):
    """One-time algebraic fold of the fixed module parameters.

    feature_projection(cat(value_embedding(v), desc)) ==
        desc @ Wp_desc^T + v * (Wv^T @ Wp_val^T) + (bv @ Wp_val^T + bp)
    and desc @ Wp_desc^T is pre-applied to the constant description table.
    """
    table = params["embedded_descriptions"]             # [num_desc, 768]
    wv = params["value_embedding_w"]                    # [768, 1]  (torch layout)
    bv = params["value_embedding_b"]                    # [768]
    wp = params["feature_projection_w"]                 # [P, 1536] (torch layout)
    bp = params["feature_projection_b"]                 # [P]
    P = wp.shape[0]

    wp_val = wp[:, :DESCRIPTION_SIZE].T                 # [768, P]
    wp_desc = wp[:, DESCRIPTION_SIZE:].T                # [768, P]

    hi = jax.lax.Precision.HIGHEST
    table_proj = jnp.dot(table, wp_desc, precision=hi)                 # [num_desc, P]
    wv_proj = jnp.dot(wv.T, wp_val, precision=hi)                      # [1, P]
    b_proj = jnp.dot(bv[None, :], wp_val, precision=hi) + bp[None, :]  # [1, P]

    num_desc = table.shape[0]
    d_pad = _round_up(num_desc, _LANE)
    p_pad = _round_up(P, _LANE)
    table_proj = jnp.pad(table_proj, ((0, d_pad - num_desc), (0, p_pad - P)))
    wv_proj = jnp.pad(wv_proj, ((0, 0), (0, p_pad - P)))
    b_proj = jnp.pad(b_proj, ((0, 0), (0, p_pad - P)))
    return table_proj, wv_proj, b_proj, P


def init_params(key, num_descriptions, projection_dim):
    """Deterministic synthetic parameters, shapes matching the torch module."""
    k_tab, k_wv, k_bv, k_wp, k_bp = jax.random.split(key, 5)
    # embedded_descriptions: precomputed RoBERTa outputs, [num_desc, 768].
    table = jax.random.normal(k_tab, (num_descriptions, DESCRIPTION_SIZE),
                              jnp.float32)
    # value_embedding = nn.Linear(1, 768): weight [768, 1], bias [768].
    wv = 0.1 * jax.random.normal(k_wv, (DESCRIPTION_SIZE, 1), jnp.float32)
    bv = 0.1 * jax.random.normal(k_bv, (DESCRIPTION_SIZE,), jnp.float32)
    # feature_projection = nn.Linear(1536, P): weight [P, 1536], bias [P].
    wp = 0.02 * jax.random.normal(
        k_wp, (projection_dim, 2 * DESCRIPTION_SIZE), jnp.float32)
    bp = 0.02 * jax.random.normal(k_bp, (projection_dim,), jnp.float32)
    return {
        "embedded_descriptions": table,
        "value_embedding_w": wv,
        "value_embedding_b": bv,
        "feature_projection_w": wp,
        "feature_projection_b": bp,
    }


def reference_forward(description_idx, values, params):
    """Pure-JAX reference mirroring the PyTorch forward (unfolded params)."""
    hi = jax.lax.Precision.HIGHEST
    table = params["embedded_descriptions"]
    desc_emb = table[description_idx]                                   # [B,N,768]
    val_emb = (jnp.dot(values, params["value_embedding_w"].T, precision=hi)
               + params["value_embedding_b"])                           # [B,N,768]
    x = jnp.concatenate([val_emb, desc_emb], axis=-1)                   # [B,N,1536]
    return (jnp.dot(x, params["feature_projection_w"].T, precision=hi)
            + params["feature_projection_b"])


if __name__ == "__main__":
    key = jax.random.PRNGKey(0)
    k_params, k_idx, k_vals = jax.random.split(key, 3)

    num_descriptions = 20
    projection_dim = 128
    B, N = 2, 8  # batch of 2, 8 graph nodes each

    params = init_params(k_params, num_descriptions, projection_dim)
    description_idx = jax.random.randint(k_idx, (B, N), 0, num_descriptions,
                                         dtype=jnp.int32)
    values = jax.random.uniform(k_vals, (B, N, 1), jnp.float32)

    # One-time parameter fold (amortized across forward calls).
    table_proj, wv_proj, b_proj, P = fold_params(params)

    out = node_embedder_forward(description_idx, values,
                                table_proj, wv_proj, b_proj, proj_dim=P)
    out = jax.block_until_ready(out)

    ref = reference_forward(description_idx, values, params)
    assert out.shape == (B, N, projection_dim)
    assert jnp.allclose(out, ref, atol=1e-3, rtol=1e-3), "mismatch vs reference"

    # TODO(synk): RoBERTa description encoding / description-dict loading is an
    # offline precompute in the torch module and is not part of forward().
    print("KERNEL_OK")
</pallas_src>

<mosaic_0001>
module attributes {stable_mosaic.version = 11 : i64} {
  func.func @node_embed_kernel(%arg0: i32, %arg1: memref<16x1xi32, #tpu.memory_space<vmem>>, %arg2: memref<16x1xf32, #tpu.memory_space<vmem>>, %arg3: memref<128x128xf32, #tpu.memory_space<vmem>>, %arg4: memref<1x128xf32, #tpu.memory_space<vmem>>, %arg5: memref<1x128xf32, #tpu.memory_space<vmem>>, %arg6: memref<16x128xf32, #tpu.memory_space<vmem>>) attributes {dimension_semantics = [#tpu.dimension_semantics<parallel>], iteration_bounds = array<i64: 1>, scalar_prefetch = 0 : i64, scratch_operands = 0 : i64, tpu.core_type = #tpu.core_type<tc>, window_params = [{transform_indices = @transform_0, window_bounds = array<i64: 16, 1>}, {transform_indices = @transform_1, window_bounds = array<i64: 16, 1>}, {pipeline_mode = #tpu.pipeline_mode<synchronous>, transform_indices = @transform_2, window_bounds = array<i64: 128, 128>}, {pipeline_mode = #tpu.pipeline_mode<synchronous>, transform_indices = @transform_3, window_bounds = array<i64: 1, 128>}, {pipeline_mode = #tpu.pipeline_mode<synchronous>, transform_indices = @transform_4, window_bounds = array<i64: 1, 128>}, {transform_indices = @transform_5, window_bounds = array<i64: 16, 128>}]} {
    %c0 = arith.constant 0 : index
    %c0_0 = arith.constant 0 : index
    %0 = vector.load %arg1[%c0, %c0_0] : memref<16x1xi32, #tpu.memory_space<vmem>>, vector<16x1xi32>
    %1 = tpu.iota {dimensions = array<i32: 1>} : vector<16x128xi32>
    %2 = vector.broadcast %0 : vector<16x1xi32> to vector<16x128xi32>
    %3 = arith.cmpi eq, %1, %2 : vector<16x128xi32>
    %4 = arith.extui %3 : vector<16x128xi1> to vector<16x128xi32>
    %5 = arith.sitofp %4 : vector<16x128xi32> to vector<16x128xf32>
    %c0_1 = arith.constant 0 : index
    %c0_2 = arith.constant 0 : index
    %6 = vector.load %arg3[%c0_1, %c0_2] : memref<128x128xf32, #tpu.memory_space<vmem>>, vector<128x128xf32>
    %cst = arith.constant dense<0.000000e+00> : vector<16x128xf32>
    %7 = tpu.matmul %5, %6, %cst {dimension_numbers = #tpu.dot_dimension_numbers<[1], [0], [0], [1], [0, 0, 1, 1], [], []>} : vector<16x128xf32>, vector<128x128xf32>, vector<16x128xf32> -> vector<16x128xf32>
    %c0_3 = arith.constant 0 : index
    %c0_4 = arith.constant 0 : index
    %8 = vector.load %arg2[%c0_3, %c0_4] : memref<16x1xf32, #tpu.memory_space<vmem>>, vector<16x1xf32>
    %c0_5 = arith.constant 0 : index
    %c0_6 = arith.constant 0 : index
    %9 = vector.load %arg4[%c0_5, %c0_6] : memref<1x128xf32, #tpu.memory_space<vmem>>, vector<1x128xf32>
    %10 = vector.broadcast %8 : vector<16x1xf32> to vector<16x128xf32>
    %11 = vector.broadcast %9 : vector<1x128xf32> to vector<16x128xf32>
    %12 = arith.mulf %10, %11 : vector<16x128xf32>
    %13 = arith.addf %7, %12 : vector<16x128xf32>
    %c0_7 = arith.constant 0 : index
    %c0_8 = arith.constant 0 : index
    %14 = vector.load %arg5[%c0_7, %c0_8] : memref<1x128xf32, #tpu.memory_space<vmem>>, vector<1x128xf32>
    %15 = vector.broadcast %14 : vector<1x128xf32> to vector<16x128xf32>
    %16 = arith.addf %13, %15 : vector<16x128xf32>
    %c0_9 = arith.constant 0 : index
    %c0_10 = arith.constant 0 : index
    %17 = vector.load %arg6[%c0_9, %c0_10] : memref<16x128xf32, #tpu.memory_space<vmem>>, vector<16x128xf32>
    tpu.vector_store %arg6[%c0_9, %c0_10], %16 {strides = array<i32>} : memref<16x128xf32, #tpu.memory_space<vmem>>, vector<16x128xf32>,
    return
  }
  func.func @transform_0(%arg0: i32) -> (i32, i32) {
    %c0_i32 = arith.constant 0 : i32
    %c0_i32_0 = arith.constant 0 : i32
    return %arg0, %c0_i32 : i32, i32
  }
  func.func @transform_1(%arg0: i32) -> (i32, i32) {
    %c0_i32 = arith.constant 0 : i32
    %c0_i32_0 = arith.constant 0 : i32
    return %arg0, %c0_i32 : i32, i32
  }
  func.func @transform_2(%arg0: i32) -> (i32, i32) {
    %c0_i32 = arith.constant 0 : i32
    %c0_i32_0 = arith.constant 0 : i32
    %c0_i32_1 = arith.constant 0 : i32
    return %c0_i32, %c0_i32_0 : i32, i32
  }
  func.func @transform_3(%arg0: i32) -> (i32, i32) {
    %c0_i32 = arith.constant 0 : i32
    %c0_i32_0 = arith.constant 0 : i32
    %c0_i32_1 = arith.constant 0 : i32
    return %c0_i32, %c0_i32_0 : i32, i32
  }
  func.func @transform_4(%arg0: i32) -> (i32, i32) {
    %c0_i32 = arith.constant 0 : i32
    %c0_i32_0 = arith.constant 0 : i32
    %c0_i32_1 = arith.constant 0 : i32
    return %c0_i32, %c0_i32_0 : i32, i32
  }
  func.func @transform_5(%arg0: i32) -> (i32, i32) {
    %c0_i32 = arith.constant 0 : i32
    %c0_i32_0 = arith.constant 0 : i32
    return %arg0, %c0_i32 : i32, i32
  }
}

</mosaic_0001>

<llo_original>
// kernel: node_embedder_forward.1
$region0: #{node_embedder_forward.1}
  #allocation0 [shape = 'u32[]', space=smem, size = 0x4, offset = 0x4, fixed_abs, tag = 'smem constant byte address 0x4 - core index']
  #allocation1 [shape = 'u32[144,128]{1,0:T(1,128)}', space=vmem, size = 0x12000, scoped, tag = 'internal scratch']
  %s0 = inlined_call_operand.hbm [shape: s32[16,1], index: 0, kind: input, shape index: {}]
  %s1 = inlined_call_operand.hbm [shape: f32[16,1], index: 1, kind: input, shape index: {}]
  %s2 = inlined_call_operand.hbm [shape: f32[128,128], index: 2, kind: input, shape index: {}]
  %s3 = inlined_call_operand.hbm [shape: f32[1,128], index: 3, kind: input, shape index: {}]
  %s4 = inlined_call_operand.hbm [shape: f32[1,128], index: 4, kind: input, shape index: {}]
  %s5 = inlined_call_operand.hbm [shape: f32[16,128], index: 5, kind: output, shape index: {}]
  %s6 = sld [smem:[#allocation0]]
  $region50: #{node_embedder_forward.1} parent=0
    _
  %s8 = ssub.s32 1, %s6
  %s9 = scalar_select 0, %s8, %s6
  $region1: #{node_embedder_forward.1} parent=0
    #allocation2 [shape = 'u8[8192]{0}', space=vmem, size = 0x2000, scoped, tag = 'input window, operand 0, single buffered']
    #allocation3 [shape = 's32[1]{0}', space=sflag, size = 0x4, scoped, tag = 'scoped memory for node_embedder_forward.1']
    #allocation4 [shape = 's32[1]{0}', space=sflag, size = 0x4, scoped, tag = 'scoped memory for node_embedder_forward.1']
    #allocation5 [shape = 'u8[8192]{0}', space=vmem, size = 0x2000, scoped, tag = 'input window, operand 1, single buffered']
    #allocation6 [shape = 's32[1]{0}', space=sflag, size = 0x4, scoped, tag = 'scoped memory for node_embedder_forward.1']
    #allocation7 [shape = 'u8[65536]{0}', space=vmem, size = 0x10000, scoped, tag = 'input window, operand 2, single buffered']
    #allocation8 [shape = 'u8[512]{0}', space=vmem, size = 0x400, scoped, tag = 'input window, operand 3, single buffered']
    #allocation9 [shape = 's32[1]{0}', space=sflag, size = 0x4, scoped, tag = 'scoped memory for node_embedder_forward.1']
    #allocation10 [shape = 'u8[512]{0}', space=vmem, size = 0x400, scoped, tag = 'input window, operand 4, single buffered']
    #allocation11 [shape = 'u8[8192]{0}', space=vmem, size = 0x2000, scoped, tag = 'output window, operand 0, single buffered']
    %10 = vsyncpa [#allocation3], 0
    %11 = vsyncpa [#allocation6], 0
    %12 = vsyncpa [#allocation9], 0
    %13 = vsyncpa [#allocation4], 0
    // Predicated region
    $region2: #{node_embedder_forward.1} parent=1 // pred_check
      _
    $region3: #{node_embedder_forward.1} parent=1 // pred_check_branch
      %15 = sbr.rel (0) target = $region5
    $region4: #{node_embedder_forward.1} parent=1 // pred_region
      %s17 = ssub.s32 256, 256
      %18 = vsyncadd [#allocation3], %s17
      %s19 = sshll.u32 [#allocation2], 4
      %s20 = int_to_ptr.vmem [resolvable:$true] %s19
      %25 = dma.hbm_to_vmem [thread:$0]  %s0, 256, %s20, [#allocation3], 128, 128, 8
    $region5: #{node_embedder_forward.1} parent=1 // pred_fallthru
      _
    // Predicated region
    $region6: #{node_embedder_forward.1} parent=1 // pred_check
      _
    $region7: #{node_embedder_forward.1} parent=1 // pred_check_branch
      %27 = sbr.rel (0) target = $region9
    $region8: #{node_embedder_forward.1} parent=1 // pred_region
      %s29 = ssub.s32 256, 256
      %30 = vsyncadd [#allocation6], %s29
      %s31 = sshll.u32 [#allocation5], 4
      %s32 = int_to_ptr.vmem [resolvable:$true] %s31
      %37 = dma.hbm_to_vmem [thread:$0]  %s1, 256, %s32, [#allocation6], 128, 128, 8
    $region9: #{node_embedder_forward.1} parent=1 // pred_fallthru
      _
    // Predicated region
    $region10: #{node_embedder_forward.1} parent=1 // pred_check
      _
    $region11: #{node_embedder_forward.1} parent=1 // pred_check_branch
      %39 = sbr.rel (0) target = $region13
    $region12: #{node_embedder_forward.1} parent=1 // pred_region
      %s41 = ssub.s32 2048, 2048
      %42 = vsyncadd [#allocation6], %s41
      %s43 = sshll.u32 [#allocation7], 4
      %s44 = int_to_ptr.vmem [resolvable:$true] %s43
      %49 = dma.hbm_to_vmem [thread:$0]  %s2, 2048, %s44, [#allocation6], 128, 128, 8
    $region13: #{node_embedder_forward.1} parent=1 // pred_fallthru
      _
    // Predicated region
    $region14: #{node_embedder_forward.1} parent=1 // pred_check
      _
    $region15: #{node_embedder_forward.1} parent=1 // pred_check_branch
      %51 = sbr.rel (0) target = $region17
    $region16: #{node_embedder_forward.1} parent=1 // pred_region
      %s53 = ssub.s32 16, 16
      %54 = vsyncadd [#allocation9], %s53
      %s56 = sshll.u32 [#allocation8], 4
      %s57 = int_to_ptr.vmem [resolvable:$true] %s56
      %59 = dma.hbm_to_vmem [thread:$0]  %s3, 16, %s57, [#allocation9]
    $region17: #{node_embedder_forward.1} parent=1 // pred_fallthru
      _
    // Predicated region
    $region18: #{node_embedder_forward.1} parent=1 // pred_check
      _
    $region19: #{node_embedder_forward.1} parent=1 // pred_check_branch
      %61 = sbr.rel (0) target = $region21
    $region20: #{node_embedder_forward.1} parent=1 // pred_region
      %s63 = ssub.s32 16, 16
      %64 = vsyncadd [#allocation9], %s63
      %s66 = sshll.u32 [#allocation10], 4
      %s67 = int_to_ptr.vmem [resolvable:$true] %s66
      %69 = dma.hbm_to_vmem [thread:$0]  %s4, 16, %s67, [#allocation9]
    $region21: #{node_embedder_forward.1} parent=1 // pred_fallthru
      _
    // Predicated region
    $region22: #{node_embedder_forward.1} parent=1 // pred_check
      _
    $region23: #{node_embedder_forward.1} parent=1 // pred_check_branch
      %71 = sbr.rel (0) target = $region25
    $region24: #{node_embedder_forward.1} parent=1 // pred_region
      %72 = dma.done [#allocation3], 256
    $region25: #{node_embedder_forward.1} parent=1 // pred_fallthru
      _
    // Predicated region
    $region26: #{node_embedder_forward.1} parent=1 // pred_check
      _
    $region27: #{node_embedder_forward.1} parent=1 // pred_check_branch
      %74 = sbr.rel (0) target = $region29
    $region28: #{node_embedder_forward.1} parent=1 // pred_region
      %75 = dma.done [#allocation6], 256
    $region29: #{node_embedder_forward.1} parent=1 // pred_fallthru
      _
    // Predicated region
    $region30: #{node_embedder_forward.1} parent=1 // pred_check
      _
    $region31: #{node_embedder_forward.1} parent=1 // pred_check_branch
      %77 = sbr.rel (0) target = $region33
    $region32: #{node_embedder_forward.1} parent=1 // pred_region
      %78 = dma.done [#allocation6], 2048
    $region33: #{node_embedder_forward.1} parent=1 // pred_fallthru
      _
    // Predicated region
    $region34: #{node_embedder_forward.1} parent=1 // pred_check
      _
    $region35: #{node_embedder_forward.1} parent=1 // pred_check_branch
      %80 = sbr.rel (0) target = $region37
    $region36: #{node_embedder_forward.1} parent=1 // pred_region
      %81 = dma.done [#allocation9], 16
    $region37: #{node_embedder_forward.1} parent=1 // pred_fallthru
      _
    // Predicated region
    $region38: #{node_embedder_forward.1} parent=1 // pred_check
      _
    $region39: #{node_embedder_forward.1} parent=1 // pred_check_branch
      %83 = sbr.rel (0) target = $region41
    $region40: #{node_embedder_forward.1} parent=1 // pred_region
      %84 = dma.done [#allocation9], 16
    $region41: #{node_embedder_forward.1} parent=1 // pred_fallthru
      _
    %v85 = vld [vmem:[#allocation2] sm:$0xff]
    %v86 = vld [vmem:[#allocation2 + $0x8] sm:$0xff]
    %v87 = vlaneseq
    %v88 = vand.u32 %v87, 127
    %89 = vset.pattern.permute.xlu0 0
    %90 = vperm.xlu0 %89, %v85
    %v91 = vpop.permute.xlu0 %90
    %92 = vset.pattern.permute.xlu0 0
    %93 = vperm.xlu0 %92, %v86
    %v94 = vpop.permute.xlu0 %93
    %vm95 = vcmp.eq.s32.totalorder %v88, %v91
    %vm96 = vcmp.eq.s32.totalorder %v88, %v94
    %v97 = vsel %vm95, 1, 0
    %v98 = vsel %vm96, 1, 0
    %v99 = vcvt.s32.f32 %v97
    %v100 = vcvt.s32.f32 %v98
    %v101 = vld [vmem:[#allocation7] sm:$0xff]
    %v102 = vld [vmem:[#allocation7 + $0x8] sm:$0xff]
    %v103 = vld [vmem:[#allocation7 + $0x10] sm:$0xff]
    %v104 = vld [vmem:[#allocation7 + $0x18] sm:$0xff]
    %v105 = vld [vmem:[#allocation7 + $0x20] sm:$0xff]
    %v106 = vld [vmem:[#allocation7 + $0x28] sm:$0xff]
    %v107 = vld [vmem:[#allocation7 + $0x30] sm:$0xff]
    %v108 = vld [vmem:[#allocation7 + $0x38] sm:$0xff]
    %v109 = vld [vmem:[#allocation7 + $0x40] sm:$0xff]
    %v110 = vld [vmem:[#allocation7 + $0x48] sm:$0xff]
    %v111 = vld [vmem:[#allocation7 + $0x50] sm:$0xff]
    %v112 = vld [vmem:[#allocation7 + $0x58] sm:$0xff]
    %v113 = vld [vmem:[#allocation7 + $0x60] sm:$0xff]
    %v114 = vld [vmem:[#allocation7 + $0x68] sm:$0xff]
    %v115 = vld [vmem:[#allocation7 + $0x70] sm:$0xff]
    %v116 = vld [vmem:[#allocation7 + $0x78] sm:$0xff]
    %v117 = vld [vmem:[#allocation5] sm:$0xff]
    %v118 = vld [vmem:[#allocation5 + $0x8] sm:$0xff]
    %v119 = vld [vmem:[#allocation8] sm:$0x1]
    %121 = vset.pattern.permute.xlu0 0
    %122 = vperm.xlu0 %121, %v117
    %v123 = vpop.permute.xlu0 %122
    %126 = vset.pattern.permute.xlu0 0
    %127 = vperm.xlu0 %126, %v118
    %v128 = vpop.permute.xlu0 %127
    %v131 = vlaneseq
    %v132 = vshrl.u32 %v131, 7
    %v133 = vsub.s32 0, %v132
    %v134 = vrot.slane %v119, %v133
    %v136 = vmul.f32 %v123, %v134
    %v137 = vmul.f32 %v128, %v134
    %138 = vmatprep.subr.mxu0 0.0
    %139 = vmatpush1.msra.mxu0 %v101
    %140 = vmatprep.subr.mxu0 0.0
    %141 = vmatpush1.msra.mxu0 %v102
    %142 = vmatprep.subr.mxu0 0.0
    %143 = vmatpush1.msra.mxu0 %v103
    %144 = vmatprep.subr.mxu0 0.0
    %145 = vmatpush1.msra.mxu0 %v104
    %146 = vmatprep.subr.mxu0 0.0
    %147 = vmatpush1.msra.mxu0 %v105
    %148 = vmatprep.subr.mxu0 0.0
    %149 = vmatpush1.msra.mxu0 %v106
    %150 = vmatprep.subr.mxu0 0.0
    %151 = vmatpush1.msra.mxu0 %v107
    %152 = vmatprep.subr.mxu0 0.0
    %153 = vmatpush1.msra.mxu0 %v108
    %154 = vmatprep.subr.mxu0 0.0
    %155 = vmatpush1.msra.mxu0 %v109
    %156 = vmatprep.subr.mxu0 0.0
    %157 = vmatpush1.msra.mxu0 %v110
    %158 = vmatprep.subr.mxu0 0.0
    %159 = vmatpush1.msra.mxu0 %v111
    %160 = vmatprep.subr.mxu0 0.0
    %161 = vmatpush1.msra.mxu0 %v112
    %162 = vmatprep.subr.mxu0 0.0
    %163 = vmatpush1.msra.mxu0 %v113
    %164 = vmatprep.subr.mxu0 0.0
    %165 = vmatpush1.msra.mxu0 %v114
    %166 = vmatprep.subr.mxu0 0.0
    %167 = vmatpush1.msra.mxu0 %v115
    %168 = vmatprep.subr.mxu0 0.0
    %169 = vmatpush1.msra.mxu0 %v116
    %170 = vmatprep.subr.mxu0 0.0
    %171 = vmatpush1.msra.mxu0 0.0
    %172 = vmatprep.subr.mxu0 0.0
    %173 = vmatpush1.msra.mxu0 0.0
    %174 = vmatprep.subr.mxu0 0.0
    %175 = vmatpush1.msra.mxu0 0.0
    %176 = vmatprep.subr.mxu0 0.0
    %177 = vmatpush1.msra.mxu0 0.0
    %178 = vmatprep.subr.mxu0 0.0
    %179 = vmatpush1.msra.mxu0 0.0
    %180 = vmatprep.subr.mxu0 0.0
    %181 = vmatpush1.msra.mxu0 0.0
    %182 = vmatprep.subr.mxu0 0.0
    %183 = vmatpush1.msra.mxu0 0.0
    %184 = vmatprep.subr.mxu0 0.0
    %185 = vmatpush1.msra.mxu0 0.0
    %186 = vmatprep.subr.mxu0 0.0
    %187 = vmatpush1.msra.mxu0 0.0
    %188 = vmatprep.subr.mxu0 0.0
    %189 = vmatpush1.msra.mxu0 0.0
    %190 = vmatprep.subr.mxu0 0.0
    %191 = vmatpush1.msra.mxu0 0.0
    %192 = vmatprep.subr.mxu0 0.0
    %193 = vmatpush1.msra.mxu0 0.0
    %194 = vmatprep.subr.mxu0 0.0
    %195 = vmatpush1.msra.mxu0 0.0
    %196 = vmatprep.subr.mxu0 0.0
    %197 = vmatpush1.msra.mxu0 0.0
    %198 = vmatprep.subr.mxu0 0.0
    %199 = vmatpush1.msra.mxu0 0.0
    %200 = vmatprep.subr.mxu0 0.0
    %201 = vmatpush1.msra.mxu0 0.0
    %202 = vmatprep.mubr.f32.mxu0 0.0
    %203 = vmatmul.mubr.f32.gmra.mrb[0].mxu0 %v99
    %v204 = vpop.f32.mrb[0].mxu0
    %v205 = vadd.f32 %v136, %v204
    %v206 = vpop.f32.mrb[0].mxu0
    %207 = vmatprep.mubr.f32.mxu0 0.0
    %208 = vmatmul.mubr.f32.gmra.mrb[0].mxu0 %v100
    %v209 = vpop.f32.mrb[0].mxu0
    %v210 = vadd.f32 %v137, %v209
    %v211 = vpop.f32.mrb[0].mxu0
    %212 = vdwg.mxu0
    %v213 = vld [vmem:[#allocation10] sm:$0x1]
    %v215 = vlaneseq
    %v216 = vshrl.u32 %v215, 7
    %v217 = vsub.s32 0, %v216
    %v218 = vrot.slane %v213, %v217
    %v220 = vadd.f32 %v205, %v218
    %v221 = vadd.f32 %v210, %v218
    %222 = vst [vmem:[#allocation11] sm:$0xff] %v220
    %223 = vst [vmem:[#allocation11 + $0x8] sm:$0xff] %v221
    // Predicated region
    $region42: #{node_embedder_forward.1} parent=1 // pred_check
      _
    $region43: #{node_embedder_forward.1} parent=1 // pred_check_branch
      %225 = sbr.rel (0) target = $region45
    $region44: #{node_embedder_forward.1} parent=1 // pred_region
      %s227 = ssub.s32 256, 256
      %228 = vsyncadd [#allocation4], %s227
      %s229 = sshll.u32 [#allocation11], 4
      %s230 = int_to_ptr.vmem [resolvable:$true] %s229
      %235 = dma.vmem_to_hbm [thread:$0]  %s230, 256, %s5, [#allocation4], 128, 128, 8
    $region45: #{node_embedder_forward.1} parent=1 // pred_fallthru
      _
    // Predicated region
    $region46: #{node_embedder_forward.1} parent=1 // pred_check
      _
    $region47: #{node_embedder_forward.1} parent=1 // pred_check_branch
      %237 = sbr.rel (0) target = $region49
    $region48: #{node_embedder_forward.1} parent=1 // pred_region
      %238 = dma.done [#allocation4], 256
    $region49: #{node_embedder_forward.1} parent=1 // pred_fallthru
      _
    %239 = vsyncpa [#allocation3], 1
    %240 = vsyncpa [#allocation6], 1
    %241 = vsyncpa [#allocation9], 1
    %242 = vsyncpa [#allocation4], 1

</llo_original>
